<compile_context>
chip_gen: v5e
topology: v5e:2x2
jax: 0.10.0
libtpu: 0.0.40
codegen_flags: <defaults>
</compile_context>

<pallas_src>
import functools

import jax
import jax.numpy as jnp
from jax.experimental import pallas as pl
from jax.experimental.pallas import tpu as pltpu

EPS = 1e-5
LANE = 128  # 256-multiples would fully fill the v6e/v7x MXU; model dims are tiny here.


# ----------------------------------------------------------------------------
# Kernel
# ----------------------------------------------------------------------------
def _bn_relu(h, gamma, beta, act_dtype):
    """Training-mode BatchNorm1d (biased batch variance, eps=1e-5) + ReLU.

    Single reduction pass over h: var = E[h^2] - E[h]^2 (cancellation bounded
    by eps for BN).  One fused (B, l) mul+add+max; result cast to bf16 since
    it only feeds the next MXU matmul.
    """
    inv_n = 1.0 / h.shape[0]
    s1 = jnp.sum(h, axis=0, keepdims=True)
    s2 = jnp.sum(h * h, axis=0, keepdims=True)
    mean = s1 * inv_n
    var = s2 * inv_n - mean * mean
    scale = gamma * jax.lax.rsqrt(var + EPS)          # (1, l): rsqrt on EUP
    shift = beta - mean * scale                        # (1, l)
    return jnp.maximum(h * scale + shift, 0.0).astype(act_dtype)


def mlp3_kernel(x_ref,
                w1_ref, g1_ref, be1_ref,
                w2_ref, g2_ref, be2_ref,
                w3_ref, b3_ref,
                o_ref, *, act_dtype):
    mm = functools.partial(jnp.dot, preferred_element_type=jnp.float32)

    # Layer 1: Linear (bias dropped — cancelled by BN mean) -> BN -> ReLU.
    h = _bn_relu(mm(x_ref[...], w1_ref[...]), g1_ref[...], be1_ref[...], act_dtype)
    # Layer 2: Linear (bias dropped) -> BN -> ReLU.
    h = _bn_relu(mm(h, w2_ref[...]), g2_ref[...], be2_ref[...], act_dtype)
    # Layer 3: Linear with bias; lane-dense f32 store.
    o_ref[...] = (mm(h, w3_ref[...]) + b3_ref[...]).astype(o_ref.dtype)


# ----------------------------------------------------------------------------
# Wrapper
# ----------------------------------------------------------------------------
def _round_up(n, m=LANE):
    return ((n + m - 1) // m) * m


def _pad_to(a, shape):
    return jnp.pad(a, [(0, t - s) for s, t in zip(a.shape, shape)])


def prepare_params(params, matmul_dtype=jnp.bfloat16):
    """Pad feature dims to LANE multiples and cast weights to bf16 ONCE.

    Done outside the jitted forward so the pad/cast copies of every parameter
    are not re-executed per step.  b1/b2 are intentionally not included (the
    kernel drops them; BN cancels them exactly).
    """
    dim_in, l = params["w1"].shape
    dim_out = params["w3"].shape[1]
    din_p, l_p, dout_p = _round_up(dim_in), _round_up(l), _round_up(dim_out)

    prepped = {
        "w1": _pad_to(params["w1"], (din_p, l_p)).astype(matmul_dtype),
        "g1": _pad_to(params["g1"], (1, l_p)),
        "be1": _pad_to(params["be1"], (1, l_p)),
        "w2": _pad_to(params["w2"], (l_p, l_p)).astype(matmul_dtype),
        "g2": _pad_to(params["g2"], (1, l_p)),
        "be2": _pad_to(params["be2"], (1, l_p)),
        "w3": _pad_to(params["w3"], (l_p, dout_p)).astype(matmul_dtype),
        "b3": _pad_to(params["b3"], (1, dout_p)),
    }
    return jax.device_put(prepped), dim_out


def _vmem_limit_bytes(B, din_p, l_p, dout_p, itemsize=2):
    """Whole-array resident footprint (no grid pipelining) + live temps."""
    operands = (B * din_p * itemsize           # x (bf16)
                + din_p * l_p * itemsize       # w1
                + l_p * l_p * itemsize         # w2
                + l_p * dout_p * itemsize      # w3
                + 4 * l_p * 4                  # g1, be1, g2, be2 (f32)
                + dout_p * 4                   # b3
                + B * dout_p * 4)              # output (f32)
    temps = 2 * B * l_p * (4 + itemsize) + B * dout_p * 4
    est = 2 * (operands + temps)               # headroom for compiler temps
    return int(min(max(est, 32 << 20), 64 << 20))  # 64 MiB = v7x physical cap


@functools.partial(jax.jit, static_argnames=("dim_out", "matmul_dtype"))
def mlp3_forward(x, prepped, *, dim_out, matmul_dtype=jnp.bfloat16):
    """x: (B, dim_in) float32.  prepped: output of prepare_params."""
    B, dim_in = x.shape
    din_p = prepped["w1"].shape[0]
    l_p = prepped["w1"].shape[1]
    dout_p = prepped["w3"].shape[1]

    # Only x is padded / cast per call.
    xp = _pad_to(x, (B, din_p)).astype(matmul_dtype)

    out_padded = pl.pallas_call(
        functools.partial(mlp3_kernel, act_dtype=matmul_dtype),
        out_shape=jax.ShapeDtypeStruct((B, dout_p), jnp.float32),
        in_specs=[pl.BlockSpec(memory_space=pltpu.MemorySpace.VMEM)] * 9,
        out_specs=pl.BlockSpec(memory_space=pltpu.MemorySpace.VMEM),
        compiler_params=pltpu.CompilerParams(
            vmem_limit_bytes=_vmem_limit_bytes(B, din_p, l_p, dout_p)),
    )(xp,
      prepped["w1"], prepped["g1"], prepped["be1"],
      prepped["w2"], prepped["g2"], prepped["be2"],
      prepped["w3"], prepped["b3"])

    return out_padded[:, :dim_out]


# ----------------------------------------------------------------------------
# Pure-JAX reference (PyTorch training-mode semantics, biases INCLUDED so the
# in-kernel b1/b2 drop is verified against the true module math).
# ----------------------------------------------------------------------------
def mlp3_reference(x, params, matmul_dtype=jnp.bfloat16):
    def mm(a, w):
        return jnp.dot(a.astype(matmul_dtype), w.astype(matmul_dtype),
                       preferred_element_type=jnp.float32)

    def bn_relu(h, g, b):
        mean = jnp.mean(h, axis=0, keepdims=True)
        var = jnp.mean((h - mean) ** 2, axis=0, keepdims=True)
        return jnp.maximum((h - mean) * (g * jax.lax.rsqrt(var + EPS)) + b, 0.0)

    h = bn_relu(mm(x, params["w1"]) + params["b1"], params["g1"], params["be1"])
    h = bn_relu(mm(h, params["w2"]) + params["b2"], params["g2"], params["be2"])
    return mm(h, params["w3"]) + params["b3"]


def init_params(key, dim_in, l, dim_out):
    """Deterministic init. Linear weights as (in, out); biases/BN as (1, feat)."""
    ks = jax.random.split(key, 6)

    def linear(kw, kb, fan_in, fan_out):
        bound = 1.0 / jnp.sqrt(fan_in)
        w = jax.random.uniform(kw, (fan_in, fan_out), jnp.float32, -bound, bound)
        b = jax.random.uniform(kb, (1, fan_out), jnp.float32, -bound, bound)
        return w, b

    w1, b1 = linear(ks[0], ks[1], dim_in, l)
    w2, b2 = linear(ks[2], ks[3], l, l)
    w3, b3 = linear(ks[4], ks[5], l, dim_out)
    return {
        "w1": w1, "b1": b1,
        "g1": jnp.ones((1, l), jnp.float32), "be1": jnp.zeros((1, l), jnp.float32),
        "w2": w2, "b2": b2,
        "g2": jnp.ones((1, l), jnp.float32), "be2": jnp.zeros((1, l), jnp.float32),
        "w3": w3, "b3": b3,
    }


if __name__ == "__main__":
    B, dim_in, hidden_l, dim_out = 8, 32, 64, 16

    key = jax.random.PRNGKey(0)
    kx, kp = jax.random.split(key)
    x = jax.random.normal(kx, (B, dim_in), jnp.float32)
    params = init_params(kp, dim_in, hidden_l, dim_out)

    prepped, dout = prepare_params(params)          # pad + bf16-cast once
    out = mlp3_forward(x, prepped, dim_out=dout)
    out = jax.block_until_ready(out)

    assert out.shape == (B, dim_out)
    assert out.dtype == jnp.float32
    assert bool(jnp.all(jnp.isfinite(out)))

    ref = mlp3_reference(x, params)
    assert bool(jnp.allclose(out, ref, atol=2e-2, rtol=2e-2)), "kernel != reference"

    print("KERNEL_OK")
</pallas_src>

<mosaic_0001>
module attributes {stable_mosaic.version = 11 : i64} {
  func.func @mlp3_kernel(%arg0: memref<8x128xbf16, #tpu.memory_space<vmem>>, %arg1: memref<128x128xbf16, #tpu.memory_space<vmem>>, %arg2: memref<1x128xf32, #tpu.memory_space<vmem>>, %arg3: memref<1x128xf32, #tpu.memory_space<vmem>>, %arg4: memref<128x128xbf16, #tpu.memory_space<vmem>>, %arg5: memref<1x128xf32, #tpu.memory_space<vmem>>, %arg6: memref<1x128xf32, #tpu.memory_space<vmem>>, %arg7: memref<128x128xbf16, #tpu.memory_space<vmem>>, %arg8: memref<1x128xf32, #tpu.memory_space<vmem>>, %arg9: memref<8x128xf32, #tpu.memory_space<vmem>>) attributes {dimension_semantics = [], scalar_prefetch = 0 : i64, scratch_operands = 0 : i64, tpu.core_type = #tpu.core_type<tc>} {
    %c0 = arith.constant 0 : index
    %c0_0 = arith.constant 0 : index
    %0 = vector.load %arg0[%c0, %c0_0] : memref<8x128xbf16, #tpu.memory_space<vmem>>, vector<8x128xbf16>
    %c0_1 = arith.constant 0 : index
    %c0_2 = arith.constant 0 : index
    %1 = vector.load %arg1[%c0_1, %c0_2] : memref<128x128xbf16, #tpu.memory_space<vmem>>, vector<128x128xbf16>
    %cst = arith.constant dense<0.000000e+00> : vector<8x128xf32>
    %2 = tpu.matmul %0, %1, %cst {dimension_numbers = #tpu.dot_dimension_numbers<[1], [0], [0], [1], [0, 0, 1, 1], [], []>} : vector<8x128xbf16>, vector<128x128xbf16>, vector<8x128xf32> -> vector<8x128xf32>
    %c0_3 = arith.constant 0 : index
    %c0_4 = arith.constant 0 : index
    %3 = vector.load %arg2[%c0_3, %c0_4] : memref<1x128xf32, #tpu.memory_space<vmem>>, vector<1x128xf32>
    %c0_5 = arith.constant 0 : index
    %c0_6 = arith.constant 0 : index
    %4 = vector.load %arg3[%c0_5, %c0_6] : memref<1x128xf32, #tpu.memory_space<vmem>>, vector<1x128xf32>
    %cst_7 = arith.constant dense<0.000000e+00> : vector<128xf32>
    %5 = vector.multi_reduction <add>, %2, %cst_7 [0] : vector<8x128xf32> to vector<128xf32>
    %6 = vector.shape_cast %5 : vector<128xf32> to vector<1x128xf32>
    %7 = arith.mulf %2, %2 : vector<8x128xf32>
    %cst_8 = arith.constant dense<0.000000e+00> : vector<128xf32>
    %8 = vector.multi_reduction <add>, %7, %cst_8 [0] : vector<8x128xf32> to vector<128xf32>
    %9 = vector.shape_cast %8 : vector<128xf32> to vector<1x128xf32>
    %cst_9 = arith.constant 1.250000e-01 : f32
    %10 = vector.broadcast %cst_9 : f32 to vector<1x128xf32>
    %11 = arith.mulf %6, %10 : vector<1x128xf32>
    %cst_10 = arith.constant 1.250000e-01 : f32
    %12 = vector.broadcast %cst_10 : f32 to vector<1x128xf32>
    %13 = arith.mulf %9, %12 : vector<1x128xf32>
    %14 = arith.mulf %11, %11 : vector<1x128xf32>
    %15 = arith.subf %13, %14 : vector<1x128xf32>
    %cst_11 = arith.constant 9.99999974E-6 : f32
    %16 = vector.broadcast %cst_11 : f32 to vector<1x128xf32>
    %17 = arith.addf %15, %16 : vector<1x128xf32>
    %18 = math.rsqrt %17 : vector<1x128xf32>
    %19 = arith.mulf %3, %18 : vector<1x128xf32>
    %20 = arith.mulf %11, %19 : vector<1x128xf32>
    %21 = arith.subf %4, %20 : vector<1x128xf32>
    %22 = vector.broadcast %19 : vector<1x128xf32> to vector<8x128xf32>
    %23 = arith.mulf %2, %22 : vector<8x128xf32>
    %24 = vector.broadcast %21 : vector<1x128xf32> to vector<8x128xf32>
    %25 = arith.addf %23, %24 : vector<8x128xf32>
    %cst_12 = arith.constant 0.000000e+00 : f32
    %26 = vector.broadcast %cst_12 : f32 to vector<8x128xf32>
    %27 = arith.maximumf %25, %26 : vector<8x128xf32>
    %28 = arith.truncf %27 : vector<8x128xf32> to vector<8x128xbf16>
    %c0_13 = arith.constant 0 : index
    %c0_14 = arith.constant 0 : index
    %29 = vector.load %arg4[%c0_13, %c0_14] : memref<128x128xbf16, #tpu.memory_space<vmem>>, vector<128x128xbf16>
    %cst_15 = arith.constant dense<0.000000e+00> : vector<8x128xf32>
    %30 = tpu.matmul %28, %29, %cst_15 {dimension_numbers = #tpu.dot_dimension_numbers<[1], [0], [0], [1], [0, 0, 1, 1], [], []>} : vector<8x128xbf16>, vector<128x128xbf16>, vector<8x128xf32> -> vector<8x128xf32>
    %c0_16 = arith.constant 0 : index
    %c0_17 = arith.constant 0 : index
    %31 = vector.load %arg5[%c0_16, %c0_17] : memref<1x128xf32, #tpu.memory_space<vmem>>, vector<1x128xf32>
    %c0_18 = arith.constant 0 : index
    %c0_19 = arith.constant 0 : index
    %32 = vector.load %arg6[%c0_18, %c0_19] : memref<1x128xf32, #tpu.memory_space<vmem>>, vector<1x128xf32>
    %cst_20 = arith.constant dense<0.000000e+00> : vector<128xf32>
    %33 = vector.multi_reduction <add>, %30, %cst_20 [0] : vector<8x128xf32> to vector<128xf32>
    %34 = vector.shape_cast %33 : vector<128xf32> to vector<1x128xf32>
    %35 = arith.mulf %30, %30 : vector<8x128xf32>
    %cst_21 = arith.constant dense<0.000000e+00> : vector<128xf32>
    %36 = vector.multi_reduction <add>, %35, %cst_21 [0] : vector<8x128xf32> to vector<128xf32>
    %37 = vector.shape_cast %36 : vector<128xf32> to vector<1x128xf32>
    %cst_22 = arith.constant 1.250000e-01 : f32
    %38 = vector.broadcast %cst_22 : f32 to vector<1x128xf32>
    %39 = arith.mulf %34, %38 : vector<1x128xf32>
    %cst_23 = arith.constant 1.250000e-01 : f32
    %40 = vector.broadcast %cst_23 : f32 to vector<1x128xf32>
    %41 = arith.mulf %37, %40 : vector<1x128xf32>
    %42 = arith.mulf %39, %39 : vector<1x128xf32>
    %43 = arith.subf %41, %42 : vector<1x128xf32>
    %cst_24 = arith.constant 9.99999974E-6 : f32
    %44 = vector.broadcast %cst_24 : f32 to vector<1x128xf32>
    %45 = arith.addf %43, %44 : vector<1x128xf32>
    %46 = math.rsqrt %45 : vector<1x128xf32>
    %47 = arith.mulf %31, %46 : vector<1x128xf32>
    %48 = arith.mulf %39, %47 : vector<1x128xf32>
    %49 = arith.subf %32, %48 : vector<1x128xf32>
    %50 = vector.broadcast %47 : vector<1x128xf32> to vector<8x128xf32>
    %51 = arith.mulf %30, %50 : vector<8x128xf32>
    %52 = vector.broadcast %49 : vector<1x128xf32> to vector<8x128xf32>
    %53 = arith.addf %51, %52 : vector<8x128xf32>
    %cst_25 = arith.constant 0.000000e+00 : f32
    %54 = vector.broadcast %cst_25 : f32 to vector<8x128xf32>
    %55 = arith.maximumf %53, %54 : vector<8x128xf32>
    %56 = arith.truncf %55 : vector<8x128xf32> to vector<8x128xbf16>
    %c0_26 = arith.constant 0 : index
    %c0_27 = arith.constant 0 : index
    %57 = vector.load %arg7[%c0_26, %c0_27] : memref<128x128xbf16, #tpu.memory_space<vmem>>, vector<128x128xbf16>
    %cst_28 = arith.constant dense<0.000000e+00> : vector<8x128xf32>
    %58 = tpu.matmul %56, %57, %cst_28 {dimension_numbers = #tpu.dot_dimension_numbers<[1], [0], [0], [1], [0, 0, 1, 1], [], []>} : vector<8x128xbf16>, vector<128x128xbf16>, vector<8x128xf32> -> vector<8x128xf32>
    %c0_29 = arith.constant 0 : index
    %c0_30 = arith.constant 0 : index
    %59 = vector.load %arg8[%c0_29, %c0_30] : memref<1x128xf32, #tpu.memory_space<vmem>>, vector<1x128xf32>
    %60 = vector.broadcast %59 : vector<1x128xf32> to vector<8x128xf32>
    %61 = arith.addf %58, %60 : vector<8x128xf32>
    %c0_31 = arith.constant 0 : index
    %c0_32 = arith.constant 0 : index
    %62 = vector.load %arg9[%c0_31, %c0_32] : memref<8x128xf32, #tpu.memory_space<vmem>>, vector<8x128xf32>
    tpu.vector_store %arg9[%c0_31, %c0_32], %61 {strides = array<i32>} : memref<8x128xf32, #tpu.memory_space<vmem>>, vector<8x128xf32>,
    return
  }
}

</mosaic_0001>

<llo_original>
// kernel: mlp3_forward.1
$region0: #{mlp3_forward.1}
  #allocation0 [shape = 'u32[]', space=smem, size = 0x4, offset = 0x4, fixed_abs, tag = 'smem constant byte address 0x4 - core index']
  #allocation1 [shape = 'u32[72,128]{1,0:T(1,128)}', space=vmem, size = 0x9000, scoped, tag = 'internal scratch']
  %s0 = inlined_call_operand.vmem [shape: bf16[8,128], index: 0, kind: input, shape index: {}]
  %s1 = inlined_call_operand.hbm [shape: bf16[128,128], index: 1, kind: input, shape index: {}]
  %s2 = inlined_call_operand.vmem [shape: f32[1,128], index: 2, kind: input, shape index: {}]
  %s3 = inlined_call_operand.vmem [shape: f32[1,128], index: 3, kind: input, shape index: {}]
  %s4 = inlined_call_operand.hbm [shape: bf16[128,128], index: 4, kind: input, shape index: {}]
  %s5 = inlined_call_operand.vmem [shape: f32[1,128], index: 5, kind: input, shape index: {}]
  %s6 = inlined_call_operand.vmem [shape: f32[1,128], index: 6, kind: input, shape index: {}]
  %s7 = inlined_call_operand.hbm [shape: bf16[128,128], index: 7, kind: input, shape index: {}]
  %s8 = inlined_call_operand.vmem [shape: f32[1,128], index: 8, kind: input, shape index: {}]
  %s9 = inlined_call_operand.hbm [shape: f32[8,128], index: 9, kind: output, shape index: {}]
  %s10 = sld [smem:[#allocation0]]
  $region58: #{mlp3_forward.1} parent=0
    _
  %s12 = ssub.s32 1, %s10
  %s13 = scalar_select 0, %s12, %s10
  $region1: #{mlp3_forward.1} parent=0
    #allocation2 [shape = 'u8[32768]{0}', space=vmem, size = 0x8000, scoped, tag = 'input window, operand 1, single buffered']
    #allocation3 [shape = 's32[1]{0}', space=sflag, size = 0x4, scoped, tag = 'scoped memory for mlp3_forward.1']
    #allocation4 [shape = 's32[1]{0}', space=sflag, size = 0x4, scoped, tag = 'scoped memory for mlp3_forward.1']
    #allocation5 [shape = 'u8[32768]{0}', space=vmem, size = 0x8000, scoped, tag = 'input window, operand 4, single buffered']
    #allocation6 [shape = 's32[1]{0}', space=sflag, size = 0x4, scoped, tag = 'scoped memory for mlp3_forward.1']
    #allocation7 [shape = 'u8[32768]{0}', space=vmem, size = 0x8000, scoped, tag = 'input window, operand 7, single buffered']
    #allocation8 [shape = 'u8[4096]{0}', space=vmem, size = 0x1000, scoped, tag = 'output window, operand 0, single buffered']
    %14 = vsyncpa [#allocation3], 0
    %15 = vsyncpa [#allocation6], 0
    %16 = vsyncpa [#allocation4], 0
    // Predicated region
    $region2: #{mlp3_forward.1} parent=1 // pred_check
      _
    $region3: #{mlp3_forward.1} parent=1 // pred_check_branch
      %18 = sbr.rel (0) target = $region5
    $region4: #{mlp3_forward.1} parent=1 // pred_region
      _
    $region5: #{mlp3_forward.1} parent=1 // pred_fallthru
      _
    // Predicated region
    $region6: #{mlp3_forward.1} parent=1 // pred_check
      _
    $region7: #{mlp3_forward.1} parent=1 // pred_check_branch
      %20 = sbr.rel (0) target = $region9
    $region8: #{mlp3_forward.1} parent=1 // pred_region
      %22 = vsyncadd [#allocation3], 0
      %s23 = sshll.u32 %s1, 4
      %s24 = int_to_ptr.hbm [resolvable:$true] %s23
      %s25 = sshll.u32 [#allocation2], 4
      %s26 = int_to_ptr.vmem [resolvable:$true] %s25
      %31 = dma.hbm_to_vmem [thread:$0]  %s24, 1024, %s26, [#allocation3], 64, 64, 4
    $region9: #{mlp3_forward.1} parent=1 // pred_fallthru
      _
    // Predicated region
    $region10: #{mlp3_forward.1} parent=1 // pred_check
      _
    $region11: #{mlp3_forward.1} parent=1 // pred_check_branch
      %33 = sbr.rel (0) target = $region13
    $region12: #{mlp3_forward.1} parent=1 // pred_region
      _
    $region13: #{mlp3_forward.1} parent=1 // pred_fallthru
      _
    // Predicated region
    $region14: #{mlp3_forward.1} parent=1 // pred_check
      _
    $region15: #{mlp3_forward.1} parent=1 // pred_check_branch
      %35 = sbr.rel (0) target = $region17
    $region16: #{mlp3_forward.1} parent=1 // pred_region
      _
    $region17: #{mlp3_forward.1} parent=1 // pred_fallthru
      _
    // Predicated region
    $region18: #{mlp3_forward.1} parent=1 // pred_check
      _
    $region19: #{mlp3_forward.1} parent=1 // pred_check_branch
      %37 = sbr.rel (0) target = $region21
    $region20: #{mlp3_forward.1} parent=1 // pred_region
      %39 = vsyncadd [#allocation6], 0
      %s40 = sshll.u32 %s4, 4
      %s41 = int_to_ptr.hbm [resolvable:$true] %s40
      %s42 = sshll.u32 [#allocation5], 4
      %s43 = int_to_ptr.vmem [resolvable:$true] %s42
      %48 = dma.hbm_to_vmem [thread:$0]  %s41, 1024, %s43, [#allocation6], 64, 64, 4
    $region21: #{mlp3_forward.1} parent=1 // pred_fallthru
      _
    // Predicated region
    $region22: #{mlp3_forward.1} parent=1 // pred_check
      _
    $region23: #{mlp3_forward.1} parent=1 // pred_check_branch
      %50 = sbr.rel (0) target = $region25
    $region24: #{mlp3_forward.1} parent=1 // pred_region
      _
    $region25: #{mlp3_forward.1} parent=1 // pred_fallthru
      _
    // Predicated region
    $region26: #{mlp3_forward.1} parent=1 // pred_check
      _
    $region27: #{mlp3_forward.1} parent=1 // pred_check_branch
      %52 = sbr.rel (0) target = $region29
    $region28: #{mlp3_forward.1} parent=1 // pred_region
      _
    $region29: #{mlp3_forward.1} parent=1 // pred_fallthru
      _
    // Predicated region
    $region30: #{mlp3_forward.1} parent=1 // pred_check
      _
    $region31: #{mlp3_forward.1} parent=1 // pred_check_branch
      %54 = sbr.rel (0) target = $region33
    $region32: #{mlp3_forward.1} parent=1 // pred_region
      %56 = vsyncadd [#allocation6], 0
      %s57 = sshll.u32 %s7, 4
      %s58 = int_to_ptr.hbm [resolvable:$true] %s57
      %s59 = sshll.u32 [#allocation7], 4
      %s60 = int_to_ptr.vmem [resolvable:$true] %s59
      %65 = dma.hbm_to_vmem [thread:$0]  %s58, 1024, %s60, [#allocation6], 64, 64, 4
    $region33: #{mlp3_forward.1} parent=1 // pred_fallthru
      _
    // Predicated region
    $region34: #{mlp3_forward.1} parent=1 // pred_check
      _
    $region35: #{mlp3_forward.1} parent=1 // pred_check_branch
      %67 = sbr.rel (0) target = $region37
    $region36: #{mlp3_forward.1} parent=1 // pred_region
      _
    $region37: #{mlp3_forward.1} parent=1 // pred_fallthru
      _
    // Predicated region
    $region38: #{mlp3_forward.1} parent=1 // pred_check
      _
    $region39: #{mlp3_forward.1} parent=1 // pred_check_branch
      %69 = sbr.rel (0) target = $region41
    $region40: #{mlp3_forward.1} parent=1 // pred_region
      %71 = dma.done [#allocation3], 1024
    $region41: #{mlp3_forward.1} parent=1 // pred_fallthru
      _
    // Predicated region
    $region42: #{mlp3_forward.1} parent=1 // pred_check
      _
    $region43: #{mlp3_forward.1} parent=1 // pred_check_branch
      %73 = sbr.rel (0) target = $region45
    $region44: #{mlp3_forward.1} parent=1 // pred_region
      %75 = dma.done [#allocation6], 1024
    $region45: #{mlp3_forward.1} parent=1 // pred_fallthru
      _
    // Predicated region
    $region46: #{mlp3_forward.1} parent=1 // pred_check
      _
    $region47: #{mlp3_forward.1} parent=1 // pred_check_branch
      %77 = sbr.rel (0) target = $region49
    $region48: #{mlp3_forward.1} parent=1 // pred_region
      %79 = dma.done [#allocation6], 1024
    $region49: #{mlp3_forward.1} parent=1 // pred_fallthru
      _
    %v80 = vld [vmem:[%s0] sm:$0xf]
    %v81 = vld [vmem:[#allocation2] sm:$0xf]
    %v82 = vld [vmem:[#allocation2 + $0x4] sm:$0xf]
    %v83 = vld [vmem:[#allocation2 + $0x8] sm:$0xf]
    %v84 = vld [vmem:[#allocation2 + $0xc] sm:$0xf]
    %v85 = vld [vmem:[#allocation2 + $0x10] sm:$0xf]
    %v86 = vld [vmem:[#allocation2 + $0x14] sm:$0xf]
    %v87 = vld [vmem:[#allocation2 + $0x18] sm:$0xf]
    %v88 = vld [vmem:[#allocation2 + $0x1c] sm:$0xf]
    %v89 = vld [vmem:[#allocation2 + $0x20] sm:$0xf]
    %v90 = vld [vmem:[#allocation2 + $0x24] sm:$0xf]
    %v91 = vld [vmem:[#allocation2 + $0x28] sm:$0xf]
    %v92 = vld [vmem:[#allocation2 + $0x2c] sm:$0xf]
    %v93 = vld [vmem:[#allocation2 + $0x30] sm:$0xf]
    %v94 = vld [vmem:[#allocation2 + $0x34] sm:$0xf]
    %v95 = vld [vmem:[#allocation2 + $0x38] sm:$0xf]
    %v96 = vld [vmem:[#allocation2 + $0x3c] sm:$0xf]
    %v113 = vunpack.c.l.b16 %v81
    %v114 = vunpack.c.l.b16 %v82
    %v115 = vunpack.c.l.b16 %v83
    %v116 = vunpack.c.l.b16 %v84
    %v117 = vunpack.c.l.b16 %v85
    %v118 = vunpack.c.l.b16 %v86
    %v119 = vunpack.c.l.b16 %v87
    %v120 = vunpack.c.l.b16 %v88
    %v121 = vunpack.c.l.b16 %v89
    %v122 = vunpack.c.l.b16 %v90
    %v123 = vunpack.c.l.b16 %v91
    %v124 = vunpack.c.l.b16 %v92
    %v125 = vunpack.c.l.b16 %v93
    %v126 = vunpack.c.l.b16 %v94
    %v127 = vunpack.c.l.b16 %v95
    %v128 = vunpack.c.l.b16 %v96
    %v129 = vpack.c.b16 %v114, %v113
    %v130 = vpack.c.b16 %v116, %v115
    %v131 = vpack.c.b16 %v118, %v117
    %v132 = vpack.c.b16 %v120, %v119
    %v133 = vpack.c.b16 %v122, %v121
    %v134 = vpack.c.b16 %v124, %v123
    %v135 = vpack.c.b16 %v126, %v125
    %v136 = vpack.c.b16 %v128, %v127
    %145 = vmatpush.bf16.msra.mxu0 %v136
    %146 = vmatpush.bf16.msra.mxu0 %v135
    %147 = vmatpush.bf16.msra.mxu0 %v134
    %148 = vmatpush.bf16.msra.mxu0 %v133
    %149 = vmatpush.bf16.msra.mxu0 %v132
    %150 = vmatpush.bf16.msra.mxu0 %v131
    %151 = vmatpush.bf16.msra.mxu0 %v130
    %152 = vmatpush.bf16.msra.mxu0 %v129
    %153 = vmatmul.bf16.gmra.mxu0 %v80
    %v154 = vpop.f32.mrf.mxu0
    %v155 = vadd.f32 0.0, %v154
    %v156 = vpop.f32.mrf.mxu0
    %157 = vdwg.mxu0
    %v158 = vld [vmem:[%s2] sm:$0x1]
    %v159 = vld [vmem:[%s3] sm:$0x1]
    %v160 = vrot.slane %v155, 4
    %v161 = vadd.f32 %v155, %v160
    %v162 = vrot.slane %v161, 2
    %v163 = vadd.f32 %v161, %v162
    %v164 = vrot.slane %v163, 1
    %v165 = vadd.f32 %v163, %v164
    %v166 = vmul.f32 %v155, %v155
    %v167 = vrot.slane %v166, 4
    %v168 = vadd.f32 %v166, %v167
    %v169 = vrot.slane %v168, 2
    %v170 = vadd.f32 %v168, %v169
    %v171 = vrot.slane %v170, 1
    %v172 = vadd.f32 %v170, %v171
    %v173 = vmul.f32 %v165, 0.125
    %v174 = vmul.f32 %v172, 0.125
    %v175 = vmul.f32 %v173, %v173
    %v176 = vsub.f32 %v174, %v175
    %v177 = vadd.f32 %v176, 1e-05
    %v178 = vrsqrt.pop %v177
    %v179 = vmul.f32 %v178, %v177
    %v180 = vmul.f32 %v179, %v178
    %v181 = vmul.f32 0.5, %v180
    %v182 = vsub.f32 1.5, %v181
    %v183 = vmul.f32 %v178, %v182
    %vm184 = vweird.f32 %v177
    %vm185 = vweird.f32 %v178
    %vm186 = vmor %vm184, %vm185
    %v187 = vsel %vm186, %v178, %v183
    %v188 = vmul.f32 %v158, %v187
    %v189 = vmul.f32 %v173, %v188
    %v190 = vsub.f32 %v159, %v189
    %v192 = vperm.slane %v188, 0
    %v194 = vmul.f32 %v155, %v192
    %v196 = vperm.slane %v190, 0
    %v198 = vadd.f32 %v194, %v196
    %v199 = vmax.f32 %v198, 0.0
    %v200 = vpack.c.bf16 %v199, %v199
    %v201 = vld [vmem:[#allocation5] sm:$0xf]
    %v202 = vld [vmem:[#allocation5 + $0x4] sm:$0xf]
    %v203 = vld [vmem:[#allocation5 + $0x8] sm:$0xf]
    %v204 = vld [vmem:[#allocation5 + $0xc] sm:$0xf]
    %v205 = vld [vmem:[#allocation5 + $0x10] sm:$0xf]
    %v206 = vld [vmem:[#allocation5 + $0x14] sm:$0xf]
    %v207 = vld [vmem:[#allocation5 + $0x18] sm:$0xf]
    %v208 = vld [vmem:[#allocation5 + $0x1c] sm:$0xf]
    %v209 = vld [vmem:[#allocation5 + $0x20] sm:$0xf]
    %v210 = vld [vmem:[#allocation5 + $0x24] sm:$0xf]
    %v211 = vld [vmem:[#allocation5 + $0x28] sm:$0xf]
    %v212 = vld [vmem:[#allocation5 + $0x2c] sm:$0xf]
    %v213 = vld [vmem:[#allocation5 + $0x30] sm:$0xf]
    %v214 = vld [vmem:[#allocation5 + $0x34] sm:$0xf]
    %v215 = vld [vmem:[#allocation5 + $0x38] sm:$0xf]
    %v216 = vld [vmem:[#allocation5 + $0x3c] sm:$0xf]
    %v233 = vunpack.c.l.b16 %v201
    %v234 = vunpack.c.l.b16 %v202
    %v235 = vunpack.c.l.b16 %v203
    %v236 = vunpack.c.l.b16 %v204
    %v237 = vunpack.c.l.b16 %v205
    %v238 = vunpack.c.l.b16 %v206
    %v239 = vunpack.c.l.b16 %v207
    %v240 = vunpack.c.l.b16 %v208
    %v241 = vunpack.c.l.b16 %v209
    %v242 = vunpack.c.l.b16 %v210
    %v243 = vunpack.c.l.b16 %v211
    %v244 = vunpack.c.l.b16 %v212
    %v245 = vunpack.c.l.b16 %v213
    %v246 = vunpack.c.l.b16 %v214
    %v247 = vunpack.c.l.b16 %v215
    %v248 = vunpack.c.l.b16 %v216
    %v249 = vpack.c.b16 %v234, %v233
    %v250 = vpack.c.b16 %v236, %v235
    %v251 = vpack.c.b16 %v238, %v237
    %v252 = vpack.c.b16 %v240, %v239
    %v253 = vpack.c.b16 %v242, %v241
    %v254 = vpack.c.b16 %v244, %v243
    %v255 = vpack.c.b16 %v246, %v245
    %v256 = vpack.c.b16 %v248, %v247
    %265 = vmatpush.bf16.msra.mxu0 %v256
    %266 = vmatpush.bf16.msra.mxu0 %v255
    %267 = vmatpush.bf16.msra.mxu0 %v254
    %268 = vmatpush.bf16.msra.mxu0 %v253
    %269 = vmatpush.bf16.msra.mxu0 %v252
    %270 = vmatpush.bf16.msra.mxu0 %v251
    %271 = vmatpush.bf16.msra.mxu0 %v250
    %272 = vmatpush.bf16.msra.mxu0 %v249
    %273 = vmatmul.bf16.gmra.mxu0 %v200
    %v274 = vpop.f32.mrf.mxu0
    %v275 = vadd.f32 0.0, %v274
    %v276 = vpop.f32.mrf.mxu0
    %277 = vdwg.mxu0
    %v278 = vld [vmem:[%s5] sm:$0x1]
    %v279 = vld [vmem:[%s6] sm:$0x1]
    %v280 = vrot.slane %v275, 4
    %v281 = vadd.f32 %v275, %v280
    %v282 = vrot.slane %v281, 2
    %v283 = vadd.f32 %v281, %v282
    %v284 = vrot.slane %v283, 1
    %v285 = vadd.f32 %v283, %v284
    %v286 = vmul.f32 %v275, %v275
    %v287 = vrot.slane %v286, 4
    %v288 = vadd.f32 %v286, %v287
    %v289 = vrot.slane %v288, 2
    %v290 = vadd.f32 %v288, %v289
    %v291 = vrot.slane %v290, 1
    %v292 = vadd.f32 %v290, %v291
    %v293 = vmul.f32 %v285, 0.125
    %v294 = vmul.f32 %v292, 0.125
    %v295 = vmul.f32 %v293, %v293
    %v296 = vsub.f32 %v294, %v295
    %v297 = vadd.f32 %v296, 1e-05
    %v298 = vrsqrt.pop %v297
    %v299 = vmul.f32 %v298, %v297
    %v300 = vmul.f32 %v299, %v298
    %v301 = vmul.f32 0.5, %v300
    %v302 = vsub.f32 1.5, %v301
    %v303 = vmul.f32 %v298, %v302
    %vm304 = vweird.f32 %v297
    %vm305 = vweird.f32 %v298
    %vm306 = vmor %vm304, %vm305
    %v307 = vsel %vm306, %v298, %v303
    %v308 = vmul.f32 %v278, %v307
    %v309 = vmul.f32 %v293, %v308
    %v310 = vsub.f32 %v279, %v309
    %v312 = vperm.slane %v308, 0
    %v314 = vmul.f32 %v275, %v312
    %v316 = vperm.slane %v310, 0
    %v318 = vadd.f32 %v314, %v316
    %v319 = vmax.f32 %v318, 0.0
    %v320 = vpack.c.bf16 %v319, %v319
    %v321 = vld [vmem:[#allocation7] sm:$0xf]
    %v322 = vld [vmem:[#allocation7 + $0x4] sm:$0xf]
    %v323 = vld [vmem:[#allocation7 + $0x8] sm:$0xf]
    %v324 = vld [vmem:[#allocation7 + $0xc] sm:$0xf]
    %v325 = vld [vmem:[#allocation7 + $0x10] sm:$0xf]
    %v326 = vld [vmem:[#allocation7 + $0x14] sm:$0xf]
    %v327 = vld [vmem:[#allocation7 + $0x18] sm:$0xf]
    %v328 = vld [vmem:[#allocation7 + $0x1c] sm:$0xf]
    %v329 = vld [vmem:[#allocation7 + $0x20] sm:$0xf]
    %v330 = vld [vmem:[#allocation7 + $0x24] sm:$0xf]
    %v331 = vld [vmem:[#allocation7 + $0x28] sm:$0xf]
    %v332 = vld [vmem:[#allocation7 + $0x2c] sm:$0xf]
    %v333 = vld [vmem:[#allocation7 + $0x30] sm:$0xf]
    %v334 = vld [vmem:[#allocation7 + $0x34] sm:$0xf]
    %v335 = vld [vmem:[#allocation7 + $0x38] sm:$0xf]
    %v336 = vld [vmem:[#allocation7 + $0x3c] sm:$0xf]
    %v337 = vld [vmem:[%s8] sm:$0x1]
    %v339 = vperm.slane %v337, 0
    %v357 = vunpack.c.l.b16 %v321
    %v358 = vunpack.c.l.b16 %v322
    %v359 = vunpack.c.l.b16 %v323
    %v360 = vunpack.c.l.b16 %v324
    %v361 = vunpack.c.l.b16 %v325
    %v362 = vunpack.c.l.b16 %v326
    %v363 = vunpack.c.l.b16 %v327
    %v364 = vunpack.c.l.b16 %v328
    %v365 = vunpack.c.l.b16 %v329
    %v366 = vunpack.c.l.b16 %v330
    %v367 = vunpack.c.l.b16 %v331
    %v368 = vunpack.c.l.b16 %v332
    %v369 = vunpack.c.l.b16 %v333
    %v370 = vunpack.c.l.b16 %v334
    %v371 = vunpack.c.l.b16 %v335
    %v372 = vunpack.c.l.b16 %v336
    %v373 = vpack.c.b16 %v358, %v357
    %v374 = vpack.c.b16 %v360, %v359
    %v375 = vpack.c.b16 %v362, %v361
    %v376 = vpack.c.b16 %v364, %v363
    %v377 = vpack.c.b16 %v366, %v365
    %v378 = vpack.c.b16 %v368, %v367
    %v379 = vpack.c.b16 %v370, %v369
    %v380 = vpack.c.b16 %v372, %v371
    %389 = vmatpush.bf16.msra.mxu0 %v380
    %390 = vmatpush.bf16.msra.mxu0 %v379
    %391 = vmatpush.bf16.msra.mxu0 %v378
    %392 = vmatpush.bf16.msra.mxu0 %v377
    %393 = vmatpush.bf16.msra.mxu0 %v376
    %394 = vmatpush.bf16.msra.mxu0 %v375
    %395 = vmatpush.bf16.msra.mxu0 %v374
    %396 = vmatpush.bf16.msra.mxu0 %v373
    %397 = vmatmul.bf16.gmra.mxu0 %v320
    %v398 = vpop.f32.mrf.mxu0
    %v399 = vadd.f32 %v339, %v398
    %v400 = vpop.f32.mrf.mxu0
    %401 = vdwg.mxu0
    %402 = vst [vmem:[#allocation8] sm:$0xff] %v399
    // Predicated region
    $region50: #{mlp3_forward.1} parent=1 // pred_check
      _
    $region51: #{mlp3_forward.1} parent=1 // pred_check_branch
      %404 = sbr.rel (0) target = $region53
    $region52: #{mlp3_forward.1} parent=1 // pred_region
      %406 = vsyncadd [#allocation4], 0
      %s408 = sshll.u32 [#allocation8], 4
      %s409 = int_to_ptr.vmem [resolvable:$true] %s408
      %s410 = sshll.u32 %s9, 4
      %s411 = int_to_ptr.hbm [resolvable:$true] %s410
      %413 = dma.vmem_to_hbm [thread:$0]  %s409, 128, %s411, [#allocation4]
    $region53: #{mlp3_forward.1} parent=1 // pred_fallthru
      _
    // Predicated region
    $region54: #{mlp3_forward.1} parent=1 // pred_check
      _
    $region55: #{mlp3_forward.1} parent=1 // pred_check_branch
      %415 = sbr.rel (0) target = $region57
    $region56: #{mlp3_forward.1} parent=1 // pred_region
      %417 = dma.done [#allocation4], 128
    $region57: #{mlp3_forward.1} parent=1 // pred_fallthru
      _
    %418 = vsyncpa [#allocation3], 1
    %419 = vsyncpa [#allocation6], 1
    %420 = vsyncpa [#allocation4], 1

</llo_original>
